<compile_context>
chip_gen: v7x
topology: tpu7x:2x2x1
jax: 0.10.0
libtpu: 0.0.40
codegen_flags: <defaults>
</compile_context>

<pallas_src>
import jax
import jax.numpy as jnp
from jax.experimental import pallas as pl
from jax.experimental.pallas import tpu as pltpu


# BCEWithLogits(-100, 0) = max(-100,0) - (-100)*0 + log1p(exp(-100)) == 0.0 exactly in f32,
# so detection-tail padding contributes nothing without any masking.
_DET_PAD_LOGIT = -100.0


def _cdiv(a, b):
    return -(-a // b)


def _round_up(a, m):
    return _cdiv(a, m) * m


def _bce_with_logits(x, y):
    # Numerically stable BCEWithLogits: max(x,0) - x*y + log1p(exp(-|x|))
    return jnp.maximum(x, 0.0) - x * y + jnp.log1p(jnp.exp(-jnp.abs(x)))


def _fold_rows_to_8(x):
    """(R,128) f32 -> (8,128) via sublane tree-fold (R must be a multiple of 8)."""
    r = x.shape[0]
    while r > 8 and r % 16 == 0:          # binary halving while halves stay 8-aligned
        half = r // 2
        x = x[:half, :] + x[half:, :]
        r = half
    out = x[0:8, :]
    for i in range(1, r // 8):            # linear finish for odd multiples of 8
        out = out + x[i * 8:(i + 1) * 8, :]
    return out


def _make_kernel(nblk_det, nblk_sce, K, need_det_guard, need_sce_guard):
    def kernel(yt_ref, yp_ref, lg_ref, fl_ref,   # inputs
               ld_ref, lc_ref, cnt_ref):         # (8,128) f32 resident accumulators
        p = pl.program_id(0)
        k = pl.program_id(1)
        blk = p * K + k                          # K is a Python constant

        @pl.when(k == 0)
        def _init():
            ld_ref[...] = jnp.zeros_like(ld_ref)
            lc_ref[...] = jnp.zeros_like(lc_ref)
            cnt_ref[...] = jnp.zeros_like(cnt_ref)

        # ---- detection loss: sum of BCEWithLogits(y_pred, y_true) ----
        def det_body():
            yt = yt_ref[...].astype(jnp.float32)
            yp = yp_ref[...].astype(jnp.float32)
            ld_ref[...] += _fold_rows_to_8(_bce_with_logits(yp, yt))

        # ---- sequence cross entropy: packed flags (bit0=valid, bit1=paired) ----
        def sce_body():
            fl = fl_ref[...].astype(jnp.int32)
            valid = (fl & 1) != 0
            paired = (fl >> 1).astype(jnp.float32)
            lg = lg_ref[...].astype(jnp.float32)
            bce = _bce_with_logits(lg, paired)
            # Select (not multiply): inf/NaN logits at masked positions never enter the sum.
            lc_ref[...] += _fold_rows_to_8(jnp.where(valid, bce, 0.0))
            cnt_ref[...] += _fold_rows_to_8(jnp.where(valid, 1.0, 0.0))

        if need_det_guard:
            pl.when(blk < nblk_det)(det_body)
        else:
            det_body()
        if need_sce_guard:
            pl.when(blk < nblk_sce)(sce_body)
        else:
            sce_body()

    return kernel


def _lane_dense(x, padded_elems, pad_value=0, dtype=None):
    """Flatten, (optionally) narrow dtype, pad to `padded_elems`, reshape (rows,128)."""
    flat = jnp.ravel(x)
    if dtype is not None and flat.dtype != dtype:
        flat = flat.astype(dtype)
    pad = padded_elems - flat.shape[0]
    if pad:
        flat = jnp.pad(flat, (0, pad), constant_values=pad_value)
    return flat.reshape(padded_elems // 128, 128)


def _default_num_parallel():
    # v5e/v6e: 1 TensorCore -> extra parallel chunks only add rounding/clamp waste.
    # v7x: 2 TensorCores -> shard the leading "parallel" axis.
    try:
        kind = jax.devices()[0].device_kind.lower()
        if "v7" in kind:
            return 2
    except Exception:
        pass
    return 1


def _total_loss_sce_ref(y_true, y_pred, speech_label, text_label, logits,
                        logits_mask, weight=(1.0, 1.0)):
    """Pure-JAX reference / small-problem fallback (reduction='sum')."""
    B, Lt = text_label.shape
    Ls = speech_label.shape[1]
    ld = jnp.sum(_bce_with_logits(y_pred.astype(jnp.float32),
                                  y_true.astype(jnp.float32)))
    if Lt > Ls:
        sp = jnp.pad(speech_label, ((0, 0), (0, Lt - Ls)))
    elif Lt < Ls:
        sp = speech_label[:, :Lt]
    else:
        sp = speech_label
    mask = logits_mask != 0
    paired = jnp.where((text_label == sp) & mask, 1.0, 0.0)
    bce = _bce_with_logits(logits.astype(jnp.float32), paired)
    lc_sum = jnp.sum(jnp.where(mask, bce, 0.0))
    cnt = jnp.sum(mask.astype(jnp.float32))
    lc = jnp.nan_to_num(lc_sum)
    lc = jnp.nan_to_num(lc / cnt)
    lc = jnp.nan_to_num(lc * jnp.float32(B))
    LD = ld if weight[0] != 0.0 else jnp.float32(0.0)
    LC = lc if weight[1] != 0.0 else jnp.float32(0.0)
    return weight[0] * LD + weight[1] * LC, LD, LC


def total_loss_sce(y_true, y_pred, speech_label, text_label, logits, logits_mask,
                   weight=(1.0, 1.0), *, block_rows=2048, num_parallel=None,
                   narrow_det_target=True, use_pallas=None, interpret=False):
    """JAX/Pallas port of TotalLoss_SCE.forward (reduction='sum' only)."""
    # TODO(synk): only reduction='sum' (the module's default) is implemented.
    B, Lt = text_label.shape
    Ls = speech_label.shape[1]

    n_det = int(y_true.size)
    n_sce = int(B * Lt)

    if use_pallas is None:
        # Tiny problems: launch + glue overhead dominates; XLA fuses the ref path.
        use_pallas = (n_det + n_sce) >= (1 << 15)
    if not use_pallas:
        return _total_loss_sce_ref(y_true, y_pred, speech_label, text_label,
                                   logits, logits_mask, weight)

    # Pad / truncate speech_label to the text length (reference pads with 0 too).
    if Lt > Ls:
        sp2d = jnp.pad(speech_label, ((0, 0), (0, Lt - Ls)))
    elif Lt < Ls:
        sp2d = speech_label[:, :Lt]
    else:
        sp2d = speech_label

    # Pack SCE side-information into one int8 stream: bit0 = valid, bit1 = paired.
    valid2d = (logits_mask != 0)
    paired2d = (text_label == sp2d) & valid2d
    flags2d = valid2d.astype(jnp.int8) | (paired2d.astype(jnp.int8) << 1)

    # Narrow detection target (exact for {0,1} targets; halves HBM on the dominant stream).
    # TODO(synk): keep full precision if y_true carries soft targets needing > bf16.
    yt_dtype = None
    if (narrow_det_target and jnp.issubdtype(jnp.asarray(y_true).dtype, jnp.floating)
            and jnp.asarray(y_true).dtype.itemsize > 2):
        yt_dtype = jnp.bfloat16

    # ---- lane-dense layout + tiling choices ----
    max_rows = _cdiv(max(n_det, n_sce), 128)
    block_rows = max(32, min(_round_up(block_rows, 32), _round_up(max_rows, 32)))
    block_elems = block_rows * 128

    nblk_det = max(1, _cdiv(n_det, block_elems))
    nblk_sce = max(1, _cdiv(n_sce, block_elems))
    total_blocks = max(nblk_det, nblk_sce)
    if num_parallel is None:
        num_parallel = _default_num_parallel()
    P = max(1, min(num_parallel, total_blocks))   # parallel chunks
    K = _cdiv(total_blocks, P)                    # reduction steps per chunk

    # Relayout copies also perform the dtype narrowing / flag packing, so they buy HBM back.
    yt = _lane_dense(y_true, nblk_det * block_elems, 0, yt_dtype)
    yp = _lane_dense(y_pred, nblk_det * block_elems, _DET_PAD_LOGIT)
    lg = _lane_dense(logits, nblk_sce * block_elems, 0)
    fl = _lane_dense(flags2d, nblk_sce * block_elems, 0)

    det_spec = pl.BlockSpec(
        (block_rows, 128),
        lambda p, k: (jnp.minimum(p * K + k, nblk_det - 1), 0))
    sce_spec = pl.BlockSpec(
        (block_rows, 128),
        lambda p, k: (jnp.minimum(p * K + k, nblk_sce - 1), 0))
    out_spec = pl.BlockSpec((8, 128), lambda p, k: (p, 0))

    kernel = _make_kernel(nblk_det, nblk_sce, K,
                          need_det_guard=(P * K > nblk_det),
                          need_sce_guard=(P * K > nblk_sce))
    out_sds = jax.ShapeDtypeStruct((P * 8, 128), jnp.float32)

    ld_parts, lc_parts, cnt_parts = pl.pallas_call(
        kernel,
        out_shape=(out_sds, out_sds, out_sds),
        grid_spec=pltpu.PrefetchScalarGridSpec(
            num_scalar_prefetch=0,
            grid=(P, K),
            in_specs=[det_spec, det_spec, sce_spec, sce_spec],
            out_specs=(out_spec, out_spec, out_spec),
        ),
        compiler_params=pltpu.CompilerParams(
            dimension_semantics=("parallel", "arbitrary"),
            vmem_limit_bytes=32 * 1024 * 1024,
        ),
        interpret=interpret,
    )(yt, yp, lg, fl)

    # Tiny scalar epilogue (P*8*128 partials each); mirrors the torch nan_to_num chain.
    ld = jnp.sum(ld_parts)
    lc_sum = jnp.sum(lc_parts)
    cnt = jnp.sum(cnt_parts)

    lc = jnp.nan_to_num(lc_sum)
    lc = jnp.nan_to_num(lc / cnt)
    lc = jnp.nan_to_num(lc * jnp.float32(B))

    LD = ld if weight[0] != 0.0 else jnp.float32(0.0)
    LC = lc if weight[1] != 0.0 else jnp.float32(0.0)
    total = weight[0] * LD + weight[1] * LC
    return total, LD, LC


if __name__ == "__main__":
    key = jax.random.PRNGKey(0)
    k1, k2, k3, k4, k5, k6 = jax.random.split(key, 6)

    B, T = 4, 4000      # detection targets / logits (non-multiple of block -> pad path)
    Ls, Lt = 48, 192    # speech label length < text label length (exercises padding)
    V = 8               # vocab size for synthetic labels

    y_true = (jax.random.uniform(k1, (B, T)) > 0.5).astype(jnp.float32)
    y_pred = jax.random.normal(k2, (B, T), dtype=jnp.float32).astype(jnp.bfloat16)
    speech_label = jax.random.randint(k3, (B, Ls), 0, V, dtype=jnp.int32)
    text_label = jax.random.randint(k4, (B, Lt), 0, V, dtype=jnp.int32)
    logits = jax.random.normal(k5, (B, Lt), dtype=jnp.float32)
    logits_mask = (jax.random.uniform(k6, (B, Lt)) > 0.3).astype(jnp.float32)

    weight = (1.0, 1.0)   # module __init__ default (deterministic, no params)

    # Force the Pallas path with a small block so the demo exercises multi-block,
    # parallel-chunk, stream-guard and tail-padding machinery.
    total, ld, lc = total_loss_sce(y_true, y_pred, speech_label, text_label,
                                   logits, logits_mask, weight,
                                   block_rows=32, num_parallel=2, use_pallas=True)
    jax.block_until_ready((total, ld, lc))

    rt, rld, rlc = _total_loss_sce_ref(y_true, y_pred, speech_label, text_label,
                                       logits, logits_mask, weight)
    assert jnp.allclose(ld, rld, rtol=1e-4, atol=1e-2), (ld, rld)
    assert jnp.allclose(lc, rlc, rtol=1e-4, atol=1e-2), (lc, rlc)
    assert jnp.allclose(total, rt, rtol=1e-4, atol=1e-2), (total, rt)

    print("KERNEL_OK")
</pallas_src>

<mosaic_0001>
module attributes {stable_mosaic.version = 11 : i64} {
  func.func @kernel(%arg0: i32, %arg1: i32, %arg2: memref<32x128xbf16, #tpu.memory_space<vmem>>, %arg3: memref<32x128xbf16, #tpu.memory_space<vmem>>, %arg4: memref<32x128xf32, #tpu.memory_space<vmem>>, %arg5: memref<32x128xi8, #tpu.memory_space<vmem>>, %arg6: memref<8x128xf32, #tpu.memory_space<vmem>>, %arg7: memref<8x128xf32, #tpu.memory_space<vmem>>, %arg8: memref<8x128xf32, #tpu.memory_space<vmem>>) attributes {dimension_semantics = [#tpu.dimension_semantics<parallel>, #tpu.dimension_semantics<arbitrary>], iteration_bounds = array<i64: 2, 2>, scalar_prefetch = 0 : i64, scratch_operands = 0 : i64, tpu.core_type = #tpu.core_type<tc>, window_params = [{transform_indices = @transform_0, window_bounds = array<i64: 32, 128>}, {transform_indices = @transform_1, window_bounds = array<i64: 32, 128>}, {transform_indices = @transform_2, window_bounds = array<i64: 32, 128>}, {transform_indices = @transform_3, window_bounds = array<i64: 32, 128>}, {transform_indices = @transform_4, window_bounds = array<i64: 8, 128>}, {transform_indices = @transform_5, window_bounds = array<i64: 8, 128>}, {transform_indices = @transform_6, window_bounds = array<i64: 8, 128>}]} {
    %c2_i32 = arith.constant 2 : i32
    %0 = arith.muli %arg0, %c2_i32 : i32
    %1 = arith.addi %0, %arg1 : i32
    %c0_i32 = arith.constant 0 : i32
    %2 = arith.cmpi eq, %arg1, %c0_i32 : i32
    %3 = arith.extui %2 : i1 to i32
    %c0_i32_0 = arith.constant 0 : i32
    %4 = arith.cmpi ne, %3, %c0_i32_0 : i32
    scf.if %4 {
      %cst_10 = arith.constant 0.000000e+00 : f32
      %31 = vector.broadcast %cst_10 : f32 to vector<8x128xf32>
      %c0_11 = arith.constant 0 : index
      %c0_12 = arith.constant 0 : index
      %32 = vector.load %arg6[%c0_11, %c0_12] : memref<8x128xf32, #tpu.memory_space<vmem>>, vector<8x128xf32>
      tpu.vector_store %arg6[%c0_11, %c0_12], %31 {strides = array<i32>} : memref<8x128xf32, #tpu.memory_space<vmem>>, vector<8x128xf32>,
      %cst_13 = arith.constant 0.000000e+00 : f32
      %33 = vector.broadcast %cst_13 : f32 to vector<8x128xf32>
      %c0_14 = arith.constant 0 : index
      %c0_15 = arith.constant 0 : index
      %34 = vector.load %arg7[%c0_14, %c0_15] : memref<8x128xf32, #tpu.memory_space<vmem>>, vector<8x128xf32>
      tpu.vector_store %arg7[%c0_14, %c0_15], %33 {strides = array<i32>} : memref<8x128xf32, #tpu.memory_space<vmem>>, vector<8x128xf32>,
      %cst_16 = arith.constant 0.000000e+00 : f32
      %35 = vector.broadcast %cst_16 : f32 to vector<8x128xf32>
      %c0_17 = arith.constant 0 : index
      %c0_18 = arith.constant 0 : index
      %36 = vector.load %arg8[%c0_17, %c0_18] : memref<8x128xf32, #tpu.memory_space<vmem>>, vector<8x128xf32>
      tpu.vector_store %arg8[%c0_17, %c0_18], %35 {strides = array<i32>} : memref<8x128xf32, #tpu.memory_space<vmem>>, vector<8x128xf32>,
    } else {
    }
    %c0 = arith.constant 0 : index
    %c0_1 = arith.constant 0 : index
    %5 = vector.load %arg2[%c0, %c0_1] : memref<32x128xbf16, #tpu.memory_space<vmem>>, vector<32x128xbf16>
    %6 = arith.extf %5 : vector<32x128xbf16> to vector<32x128xf32>
    %c0_2 = arith.constant 0 : index
    %c0_3 = arith.constant 0 : index
    %7 = vector.load %arg3[%c0_2, %c0_3] : memref<32x128xbf16, #tpu.memory_space<vmem>>, vector<32x128xbf16>
    %8 = arith.extf %7 : vector<32x128xbf16> to vector<32x128xf32>
    %c0_4 = arith.constant 0 : index
    %c0_5 = arith.constant 0 : index
    %9 = vector.load %arg6[%c0_4, %c0_5] : memref<8x128xf32, #tpu.memory_space<vmem>>, vector<8x128xf32>
    %cst = arith.constant 0.000000e+00 : f32
    %10 = vector.broadcast %cst : f32 to vector<32x128xf32>
    %11 = arith.maximumf %8, %10 : vector<32x128xf32>
    %12 = arith.mulf %8, %6 : vector<32x128xf32>
    %13 = arith.subf %11, %12 : vector<32x128xf32>
    %14 = math.absf %8 : vector<32x128xf32>
    %cst_6 = arith.constant 0.000000e+00 : f32
    %15 = vector.broadcast %cst_6 : f32 to vector<32x128xf32>
    %16 = arith.subf %15, %14 : vector<32x128xf32>
    %17 = math.exp %16 : vector<32x128xf32>
    %18 = math.log1p %17 : vector<32x128xf32>
    %19 = arith.addf %13, %18 : vector<32x128xf32>
    %20 = vector.extract_strided_slice %19 {offsets = [0, 0], sizes = [16, 128], strides = [1, 1]} : vector<32x128xf32> to vector<16x128xf32>
    %21 = vector.extract_strided_slice %19 {offsets = [16, 0], sizes = [16, 128], strides = [1, 1]} : vector<32x128xf32> to vector<16x128xf32>
    %22 = arith.addf %20, %21 : vector<16x128xf32>
    %23 = vector.extract_strided_slice %22 {offsets = [0, 0], sizes = [8, 128], strides = [1, 1]} : vector<16x128xf32> to vector<8x128xf32>
    %24 = vector.extract_strided_slice %22 {offsets = [8, 0], sizes = [8, 128], strides = [1, 1]} : vector<16x128xf32> to vector<8x128xf32>
    %25 = arith.addf %23, %24 : vector<8x128xf32>
    %26 = arith.addf %9, %25 : vector<8x128xf32>
    %c0_7 = arith.constant 0 : index
    %c0_8 = arith.constant 0 : index
    %27 = vector.load %arg6[%c0_7, %c0_8] : memref<8x128xf32, #tpu.memory_space<vmem>>, vector<8x128xf32>
    tpu.vector_store %arg6[%c0_7, %c0_8], %26 {strides = array<i32>} : memref<8x128xf32, #tpu.memory_space<vmem>>, vector<8x128xf32>,
    %c1_i32 = arith.constant 1 : i32
    %28 = arith.cmpi slt, %1, %c1_i32 : i32
    %29 = arith.extui %28 : i1 to i32
    %c0_i32_9 = arith.constant 0 : i32
    %30 = arith.cmpi ne, %29, %c0_i32_9 : i32
    scf.if %30 {
      %c0_10 = arith.constant 0 : index
      %c0_11 = arith.constant 0 : index
      %31 = vector.load %arg5[%c0_10, %c0_11] : memref<32x128xi8, #tpu.memory_space<vmem>>, vector<32x128xi8>
      %32 = arith.extsi %31 : vector<32x128xi8> to vector<32x128xi32>
      %c1_i32_12 = arith.constant 1 : i32
      %33 = vector.broadcast %c1_i32_12 : i32 to vector<32x128xi32>
      %34 = arith.andi %32, %33 : vector<32x128xi32>
      %c0_i32_13 = arith.constant 0 : i32
      %35 = vector.broadcast %c0_i32_13 : i32 to vector<32x128xi32>
      %36 = arith.cmpi ne, %34, %35 : vector<32x128xi32>
      %c1_i32_14 = arith.constant 1 : i32
      %37 = vector.broadcast %c1_i32_14 : i32 to vector<32x128xi32>
      %38 = arith.shrsi %32, %37 : vector<32x128xi32>
      %39 = arith.sitofp %38 : vector<32x128xi32> to vector<32x128xf32>
      %c0_15 = arith.constant 0 : index
      %c0_16 = arith.constant 0 : index
      %40 = vector.load %arg4[%c0_15, %c0_16] : memref<32x128xf32, #tpu.memory_space<vmem>>, vector<32x128xf32>
      %cst_17 = arith.constant 0.000000e+00 : f32
      %41 = vector.broadcast %cst_17 : f32 to vector<32x128xf32>
      %42 = arith.maximumf %40, %41 : vector<32x128xf32>
      %43 = arith.mulf %40, %39 : vector<32x128xf32>
      %44 = arith.subf %42, %43 : vector<32x128xf32>
      %45 = math.absf %40 : vector<32x128xf32>
      %cst_18 = arith.constant 0.000000e+00 : f32
      %46 = vector.broadcast %cst_18 : f32 to vector<32x128xf32>
      %47 = arith.subf %46, %45 : vector<32x128xf32>
      %48 = math.exp %47 : vector<32x128xf32>
      %49 = math.log1p %48 : vector<32x128xf32>
      %50 = arith.addf %44, %49 : vector<32x128xf32>
      %c0_19 = arith.constant 0 : index
      %c0_20 = arith.constant 0 : index
      %51 = vector.load %arg7[%c0_19, %c0_20] : memref<8x128xf32, #tpu.memory_space<vmem>>, vector<8x128xf32>
      %cst_21 = arith.constant 0.000000e+00 : f32
      %52 = vector.broadcast %cst_21 : f32 to vector<32x128xf32>
      %53 = arith.select %36, %50, %52 : vector<32x128xi1>, vector<32x128xf32>
      %54 = vector.extract_strided_slice %53 {offsets = [0, 0], sizes = [16, 128], strides = [1, 1]} : vector<32x128xf32> to vector<16x128xf32>
      %55 = vector.extract_strided_slice %53 {offsets = [16, 0], sizes = [16, 128], strides = [1, 1]} : vector<32x128xf32> to vector<16x128xf32>
      %56 = arith.addf %54, %55 : vector<16x128xf32>
      %57 = vector.extract_strided_slice %56 {offsets = [0, 0], sizes = [8, 128], strides = [1, 1]} : vector<16x128xf32> to vector<8x128xf32>
      %58 = vector.extract_strided_slice %56 {offsets = [8, 0], sizes = [8, 128], strides = [1, 1]} : vector<16x128xf32> to vector<8x128xf32>
      %59 = arith.addf %57, %58 : vector<8x128xf32>
      %60 = arith.addf %51, %59 : vector<8x128xf32>
      %c0_22 = arith.constant 0 : index
      %c0_23 = arith.constant 0 : index
      %61 = vector.load %arg7[%c0_22, %c0_23] : memref<8x128xf32, #tpu.memory_space<vmem>>, vector<8x128xf32>
      tpu.vector_store %arg7[%c0_22, %c0_23], %60 {strides = array<i32>} : memref<8x128xf32, #tpu.memory_space<vmem>>, vector<8x128xf32>,
      %c0_24 = arith.constant 0 : index
      %c0_25 = arith.constant 0 : index
      %62 = vector.load %arg8[%c0_24, %c0_25] : memref<8x128xf32, #tpu.memory_space<vmem>>, vector<8x128xf32>
      %cst_26 = arith.constant 1.000000e+00 : f32
      %cst_27 = arith.constant 0.000000e+00 : f32
      %63 = vector.broadcast %cst_26 : f32 to vector<32x128xf32>
      %64 = vector.broadcast %cst_27 : f32 to vector<32x128xf32>
      %65 = arith.select %36, %63, %64 : vector<32x128xi1>, vector<32x128xf32>
      %66 = vector.extract_strided_slice %65 {offsets = [0, 0], sizes = [16, 128], strides = [1, 1]} : vector<32x128xf32> to vector<16x128xf32>
      %67 = vector.extract_strided_slice %65 {offsets = [16, 0], sizes = [16, 128], strides = [1, 1]} : vector<32x128xf32> to vector<16x128xf32>
      %68 = arith.addf %66, %67 : vector<16x128xf32>
      %69 = vector.extract_strided_slice %68 {offsets = [0, 0], sizes = [8, 128], strides = [1, 1]} : vector<16x128xf32> to vector<8x128xf32>
      %70 = vector.extract_strided_slice %68 {offsets = [8, 0], sizes = [8, 128], strides = [1, 1]} : vector<16x128xf32> to vector<8x128xf32>
      %71 = arith.addf %69, %70 : vector<8x128xf32>
      %72 = arith.addf %62, %71 : vector<8x128xf32>
      %c0_28 = arith.constant 0 : index
      %c0_29 = arith.constant 0 : index
      %73 = vector.load %arg8[%c0_28, %c0_29] : memref<8x128xf32, #tpu.memory_space<vmem>>, vector<8x128xf32>
      tpu.vector_store %arg8[%c0_28, %c0_29], %72 {strides = array<i32>} : memref<8x128xf32, #tpu.memory_space<vmem>>, vector<8x128xf32>,
    } else {
    }
    return
  }
  func.func @transform_0(%arg0: i32, %arg1: i32) -> (i32, i32) {
    %c2_i32 = arith.constant 2 : i32
    %0 = arith.muli %arg0, %c2_i32 : i32
    %1 = arith.addi %0, %arg1 : i32
    %c3_i32 = arith.constant 3 : i32
    %2 = arith.minsi %1, %c3_i32 : i32
    %c0_i32 = arith.constant 0 : i32
    %c0_i32_0 = arith.constant 0 : i32
    return %2, %c0_i32 : i32, i32
  }
  func.func @transform_1(%arg0: i32, %arg1: i32) -> (i32, i32) {
    %c2_i32 = arith.constant 2 : i32
    %0 = arith.muli %arg0, %c2_i32 : i32
    %1 = arith.addi %0, %arg1 : i32
    %c3_i32 = arith.constant 3 : i32
    %2 = arith.minsi %1, %c3_i32 : i32
    %c0_i32 = arith.constant 0 : i32
    %c0_i32_0 = arith.constant 0 : i32
    return %2, %c0_i32 : i32, i32
  }
  func.func @transform_2(%arg0: i32, %arg1: i32) -> (i32, i32) {
    %c2_i32 = arith.constant 2 : i32
    %0 = arith.muli %arg0, %c2_i32 : i32
    %1 = arith.addi %0, %arg1 : i32
    %c0_i32 = arith.constant 0 : i32
    %2 = arith.minsi %1, %c0_i32 : i32
    %c0_i32_0 = arith.constant 0 : i32
    %c0_i32_1 = arith.constant 0 : i32
    return %2, %c0_i32_0 : i32, i32
  }
  func.func @transform_3(%arg0: i32, %arg1: i32) -> (i32, i32) {
    %c2_i32 = arith.constant 2 : i32
    %0 = arith.muli %arg0, %c2_i32 : i32
    %1 = arith.addi %0, %arg1 : i32
    %c0_i32 = arith.constant 0 : i32
    %2 = arith.minsi %1, %c0_i32 : i32
    %c0_i32_0 = arith.constant 0 : i32
    %c0_i32_1 = arith.constant 0 : i32
    return %2, %c0_i32_0 : i32, i32
  }
  func.func @transform_4(%arg0: i32, %arg1: i32) -> (i32, i32) {
    %c0_i32 = arith.constant 0 : i32
    %c0_i32_0 = arith.constant 0 : i32
    return %arg0, %c0_i32 : i32, i32
  }
  func.func @transform_5(%arg0: i32, %arg1: i32) -> (i32, i32) {
    %c0_i32 = arith.constant 0 : i32
    %c0_i32_0 = arith.constant 0 : i32
    return %arg0, %c0_i32 : i32, i32
  }
  func.func @transform_6(%arg0: i32, %arg1: i32) -> (i32, i32) {
    %c0_i32 = arith.constant 0 : i32
    %c0_i32_0 = arith.constant 0 : i32
    return %arg0, %c0_i32 : i32, i32
  }
}

</mosaic_0001>

<llo_original>
// kernel: tpu_custom_call.1
$region0: #{tpu_custom_call.1}
  #allocation0 [shape = 'u32[]', space=smem, size = 0x4, offset = 0x4, fixed_abs, tag = 'smem constant byte address 0x4 - core index']
  #allocation1 [shape = 'u32[144,128]{1,0:T(1,128)}', space=vmem, size = 0x12000, scoped, tag = 'internal scratch']
  %s0 = inlined_call_operand.hbm [shape: bf16[128,128], index: 0, kind: input, shape index: {}]
  %s1 = inlined_call_operand.hbm [shape: bf16[128,128], index: 1, kind: input, shape index: {}]
  %s2 = inlined_call_operand.hbm [shape: f32[32,128], index: 2, kind: input, shape index: {}]
  %s3 = inlined_call_operand.vmem [shape: s8[32,128], index: 3, kind: input, shape index: {}]
  %s4 = inlined_call_operand.hbm [shape: f32[16,128], index: 4, kind: output, shape index: {0}]
  %s5 = inlined_call_operand.hbm [shape: f32[16,128], index: 5, kind: output, shape index: {1}]
  %s6 = inlined_call_operand.hbm [shape: f32[16,128], index: 6, kind: output, shape index: {2}]
  %7 = xla_tuple %s4, %s5, %s6
  %s8 = sld [smem:[#allocation0]]
  $region85: #{tpu_custom_call.1} parent=0
    _
  %s10 = ssub.s32 1, %s8
  %s11 = scalar_select 0, %s10, %s8
  $region1: #{tpu_custom_call.1} parent=0
    #allocation2 [shape = 'u8[16384]{0}', space=vmem, size = 0x4000, scoped, tag = 'input window, operand 0']
    #allocation3 [shape = 's32[2]{0}', space=sflag, size = 0x8, scoped, tag = 'scoped memory for tpu_custom_call.1']
    #allocation4 [shape = 's32[2]{0}', space=sflag, size = 0x8, scoped, tag = 'scoped memory for tpu_custom_call.1']
    #allocation5 [shape = 'u8[16384]{0}', space=vmem, size = 0x4000, scoped, tag = 'input window, operand 1']
    #allocation6 [shape = 's32[2]{0}', space=sflag, size = 0x8, scoped, tag = 'scoped memory for tpu_custom_call.1']
    #allocation7 [shape = 'u8[32768]{0}', space=vmem, size = 0x8000, scoped, tag = 'input window, operand 2']
    #allocation8 [shape = 'u8[8192]{0}', space=vmem, size = 0x2000, scoped, tag = 'output window, operand 0']
    #allocation9 [shape = 'u8[8192]{0}', space=vmem, size = 0x2000, scoped, tag = 'output window, operand 1']
    #allocation10 [shape = 's32[2]{0}', space=sflag, size = 0x8, scoped, tag = 'scoped memory for tpu_custom_call.1']
    #allocation11 [shape = 'u8[8192]{0}', space=vmem, size = 0x2000, scoped, tag = 'output window, operand 2']
    %12 = vsyncpa [#allocation3], 0
    %s13 = scalar_lea.sflag [#allocation3], 1
    %14 = vsyncpa %s13, 0
    %15 = vsyncpa [#allocation6], 0
    %s16 = scalar_lea.sflag [#allocation6], 1
    %17 = vsyncpa %s16, 0
    %18 = vsyncpa [#allocation4], 0
    %s19 = scalar_lea.sflag [#allocation4], 1
    %20 = vsyncpa %s19, 0
    %21 = vsyncpa [#allocation10], 0
    %s22 = scalar_lea.sflag [#allocation10], 1
    %23 = vsyncpa %s22, 0
    loop: start=0, step=1, limit=6
    $region2: #{tpu_custom_call.1} parent=1 // loop_pre_header
      _
    $region3: #{tpu_custom_call.1} parent=1 // loop_header
      %s25 = sphi 0, %s29
      %p26 = scmp.ge.s32.totalorder %s25, 6
      %s32 = sphi 0, %s44
      %s33 = sphi 0, %s40
      %s34 = sphi 0, %s32
      %s35 = sphi 0, %s33
      %s36 = sphi 0, %s34
      %s37 = sphi 0, %s35
      %s55 = sphi 0, %s57
      %s58 = sphi 0, %s55
      %s59 = sphi 0, %s58
      %s75 = sphi 0, %s59
      %s89 = sphi 0, %s91
      %s92 = sphi 0, %s89
      %s93 = sphi 0, %s92
      %s109 = sphi 0, %s93
      %s123 = sphi 0, %s125
      %s126 = sphi 0, %s123
      %s127 = sphi 0, %s126
      %s143 = sphi 0, %s127
      %s157 = sphi 0, %s159
      %s160 = sphi 0, %s157
      %s161 = sphi 0, %s160
      %s177 = sphi 0, %s161
      %s183 = sphi 0, %s185
      %s186 = sphi 0, %s183
      %s187 = sphi 0, %s186
      %s203 = sphi 0, %s187
      %s209 = sphi 0, %s211
      %s212 = sphi 0, %s209
      %s213 = sphi 0, %s212
      %s229 = sphi 0, %s213
      %s235 = sphi 0, %s237
      %s238 = sphi 0, %s235
      %s239 = sphi 0, %s238
      %s255 = sphi 0, %s239
    $region4: #{tpu_custom_call.1} parent=1 // loop_header_branch
      %28 = sbr.rel (%p26) target = $region8
    $region5: #{tpu_custom_call.1} parent=1 // loop_body
      %s30 = ssub.s32 %s25, 1
      %s31 = ssub.s32 %s25, 2
      %s38 = sadd.s32 1, %s33
      %p39 = scmp.ge.s32.totalorder %s38, 2
      %s40 = scalar_select %p39, 0, %s38
      %s41 = sadd.s32 1, %s32
      %s42 = scalar_select %p39, %s41, %s32
      %p43 = scmp.ge.s32.totalorder %s42, 2
      %s44 = scalar_select %p43, 0, %s42
      %s45 = smul.u32 %s32, 2
      %s46 = sadd.s32 %s45, %s33
      %p47 = scmp.lt.s32.totalorder %s46, 3
      %s48 = scalar_select %p47, %s46, 3
      %s49 = smul.u32 %s44, 2
      %s50 = sadd.s32 %s49, %s40
      %p51 = scmp.lt.s32.totalorder %s50, 3
      %s52 = scalar_select %p51, %s50, 3
      %s53 = ssub.s32 %s48, %s52
      %p54 = scmp.eq.s32.totalorder %s53, 0
      %s56 = sadd.s32 %s55, 1
      %s57 = scalar_select %p54, %s55, %s56
      %p60 = pneg %p54
      %p61 = scmp.eq.s32.totalorder %s25, 3
      %p62 = por %p60, %p61
      %p63 = scmp.ne.s32.totalorder %s55, %s58
      %p64 = scmp.eq.s32.totalorder %s25, 0
      %p65 = por %p63, %p64
      %p66 = scmp.ne.s32.totalorder %s55, %s58
      %p67 = scmp.eq.s32.totalorder %s30, 3
      %p68 = por %p66, %p67
      %p69 = scmp.ne.s32.totalorder %s58, %s59
      %p70 = scmp.eq.s32.totalorder %s30, 0
      %p71 = por %p69, %p70
      %p72 = scmp.ne.s32.totalorder %s58, %s59
      %p73 = scmp.eq.s32.totalorder %s31, 3
      %p74 = por %p72, %p73
      %p76 = scmp.ne.s32.totalorder %s59, %s75
      %p77 = scmp.eq.s32.totalorder %s31, 0
      %p78 = por %p76, %p77
      %s79 = smul.u32 %s32, 2
      %s80 = sadd.s32 %s79, %s33
      %p81 = scmp.lt.s32.totalorder %s80, 3
      %s82 = scalar_select %p81, %s80, 3
      %s83 = smul.u32 %s44, 2
      %s84 = sadd.s32 %s83, %s40
      %p85 = scmp.lt.s32.totalorder %s84, 3
      %s86 = scalar_select %p85, %s84, 3
      %s87 = ssub.s32 %s82, %s86
      %p88 = scmp.eq.s32.totalorder %s87, 0
      %s90 = sadd.s32 %s89, 1
      %s91 = scalar_select %p88, %s89, %s90
      %p94 = pneg %p88
      %p95 = scmp.eq.s32.totalorder %s25, 3
      %p96 = por %p94, %p95
      %p97 = scmp.ne.s32.totalorder %s89, %s92
      %p98 = scmp.eq.s32.totalorder %s25, 0
      %p99 = por %p97, %p98
      %p100 = scmp.ne.s32.totalorder %s89, %s92
      %p101 = scmp.eq.s32.totalorder %s30, 3
      %p102 = por %p100, %p101
      %p103 = scmp.ne.s32.totalorder %s92, %s93
      %p104 = scmp.eq.s32.totalorder %s30, 0
      %p105 = por %p103, %p104
      %p106 = scmp.ne.s32.totalorder %s92, %s93
      %p107 = scmp.eq.s32.totalorder %s31, 3
      %p108 = por %p106, %p107
      %p110 = scmp.ne.s32.totalorder %s93, %s109
      %p111 = scmp.eq.s32.totalorder %s31, 0
      %p112 = por %p110, %p111
      %s113 = smul.u32 %s32, 2
      %s114 = sadd.s32 %s113, %s33
      %p115 = scmp.lt.s32.totalorder %s114, 0
      %s116 = scalar_select %p115, %s114, 0
      %s117 = smul.u32 %s44, 2
      %s118 = sadd.s32 %s117, %s40
      %p119 = scmp.lt.s32.totalorder %s118, 0
      %s120 = scalar_select %p119, %s118, 0
      %s121 = ssub.s32 %s116, %s120
      %p122 = scmp.eq.s32.totalorder %s121, 0
      %s124 = sadd.s32 %s123, 1
      %s125 = scalar_select %p122, %s123, %s124
      %p128 = pneg %p122
      %p129 = scmp.eq.s32.totalorder %s25, 3
      %p130 = por %p128, %p129
      %p131 = scmp.ne.s32.totalorder %s123, %s126
      %p132 = scmp.eq.s32.totalorder %s25, 0
      %p133 = por %p131, %p132
      %p134 = scmp.ne.s32.totalorder %s123, %s126
      %p135 = scmp.eq.s32.totalorder %s30, 3
      %p136 = por %p134, %p135
      %p137 = scmp.ne.s32.totalorder %s126, %s127
      %p138 = scmp.eq.s32.totalorder %s30, 0
      %p139 = por %p137, %p138
      %p140 = scmp.ne.s32.totalorder %s126, %s127
      %p141 = scmp.eq.s32.totalorder %s31, 3
      %p142 = por %p140, %p141
      %p144 = scmp.ne.s32.totalorder %s127, %s143
      %p145 = scmp.eq.s32.totalorder %s31, 0
      %p146 = por %p144, %p145
      %s147 = smul.u32 %s32, 2
      %s148 = sadd.s32 %s147, %s33
      %p149 = scmp.lt.s32.totalorder %s148, 0
      %s150 = scalar_select %p149, %s148, 0
      %s151 = smul.u32 %s44, 2
      %s152 = sadd.s32 %s151, %s40
      %p153 = scmp.lt.s32.totalorder %s152, 0
      %s154 = scalar_select %p153, %s152, 0
      %s155 = ssub.s32 %s150, %s154
      %p156 = scmp.eq.s32.totalorder %s155, 0
      %s158 = sadd.s32 %s157, 1
      %s159 = scalar_select %p156, %s157, %s158
      %p162 = pneg %p156
      %p163 = scmp.eq.s32.totalorder %s25, 3
      %p164 = por %p162, %p163
      %p165 = scmp.ne.s32.totalorder %s157, %s160
      %p166 = scmp.eq.s32.totalorder %s25, 0
      %p167 = por %p165, %p166
      %p168 = scmp.ne.s32.totalorder %s157, %s160
      %p169 = scmp.eq.s32.totalorder %s30, 3
      %p170 = por %p168, %p169
      %p171 = scmp.ne.s32.totalorder %s160, %s161
      %p172 = scmp.eq.s32.totalorder %s30, 0
      %p173 = por %p171, %p172
      %p174 = scmp.ne.s32.totalorder %s160, %s161
      %p175 = scmp.eq.s32.totalorder %s31, 3
      %p176 = por %p174, %p175
      %p178 = scmp.ne.s32.totalorder %s161, %s177
      %p179 = scmp.eq.s32.totalorder %s31, 0
      %p180 = por %p178, %p179
      %s181 = ssub.s32 %s32, %s44
      %p182 = scmp.eq.s32.totalorder %s181, 0
      %s184 = sadd.s32 %s183, 1
      %s185 = scalar_select %p182, %s183, %s184
      %p188 = pneg %p182
      %p189 = scmp.eq.s32.totalorder %s25, 3
      %p190 = por %p188, %p189
      %p191 = scmp.ne.s32.totalorder %s183, %s186
      %p192 = scmp.eq.s32.totalorder %s25, 0
      %p193 = por %p191, %p192
      %p194 = scmp.ne.s32.totalorder %s183, %s186
      %p195 = scmp.eq.s32.totalorder %s30, 3
      %p196 = por %p194, %p195
      %p197 = scmp.ne.s32.totalorder %s186, %s187
      %p198 = scmp.eq.s32.totalorder %s30, 0
      %p199 = por %p197, %p198
      %p200 = scmp.ne.s32.totalorder %s186, %s187
      %p201 = scmp.eq.s32.totalorder %s31, 3
      %p202 = por %p200, %p201
      %p204 = scmp.ne.s32.totalorder %s187, %s203
      %p205 = scmp.eq.s32.totalorder %s31, 0
      %p206 = por %p204, %p205
      %s207 = ssub.s32 %s32, %s44
      %p208 = scmp.eq.s32.totalorder %s207, 0
      %s210 = sadd.s32 %s209, 1
      %s211 = scalar_select %p208, %s209, %s210
      %p214 = pneg %p208
      %p215 = scmp.eq.s32.totalorder %s25, 3
      %p216 = por %p214, %p215
      %p217 = scmp.ne.s32.totalorder %s209, %s212
      %p218 = scmp.eq.s32.totalorder %s25, 0
      %p219 = por %p217, %p218
      %p220 = scmp.ne.s32.totalorder %s209, %s212
      %p221 = scmp.eq.s32.totalorder %s30, 3
      %p222 = por %p220, %p221
      %p223 = scmp.ne.s32.totalorder %s212, %s213
      %p224 = scmp.eq.s32.totalorder %s30, 0
      %p225 = por %p223, %p224
      %p226 = scmp.ne.s32.totalorder %s212, %s213
      %p227 = scmp.eq.s32.totalorder %s31, 3
      %p228 = por %p226, %p227
      %p230 = scmp.ne.s32.totalorder %s213, %s229
      %p231 = scmp.eq.s32.totalorder %s31, 0
      %p232 = por %p230, %p231
      %s233 = ssub.s32 %s32, %s44
      %p234 = scmp.eq.s32.totalorder %s233, 0
      %s236 = sadd.s32 %s235, 1
      %s237 = scalar_select %p234, %s235, %s236
      %p240 = pneg %p234
      %p241 = scmp.eq.s32.totalorder %s25, 3
      %p242 = por %p240, %p241
      %p243 = scmp.ne.s32.totalorder %s235, %s238
      %p244 = scmp.eq.s32.totalorder %s25, 0
      %p245 = por %p243, %p244
      %p246 = scmp.ne.s32.totalorder %s235, %s238
      %p247 = scmp.eq.s32.totalorder %s30, 3
      %p248 = por %p246, %p247
      %p249 = scmp.ne.s32.totalorder %s238, %s239
      %p250 = scmp.eq.s32.totalorder %s30, 0
      %p251 = por %p249, %p250
      %p252 = scmp.ne.s32.totalorder %s238, %s239
      %p253 = scmp.eq.s32.totalorder %s31, 3
      %p254 = por %p252, %p253
      %p256 = scmp.ne.s32.totalorder %s239, %s255
      %p257 = scmp.eq.s32.totalorder %s31, 0
      %p258 = por %p256, %p257
      %p259 = scmp.le.s32.totalorder 1, %s25
      %p260 = scmp.lt.s32.totalorder %s25, 5
      %p261 = pnand %p259, %p260
      %p262 = pneg %p261
      // Predicated region
      $region9: #{tpu_custom_call.1} parent=5 // pred_check
        _
      $region10: #{tpu_custom_call.1} parent=5 // pred_check_branch
        %264 = sbr.rel (%p261) target = $region12
      $region11: #{tpu_custom_call.1} parent=5 // pred_region
        %s265 = ssub.s32 %s25, 1
      $region12: #{tpu_custom_call.1} parent=5 // pred_fallthru
        _
      %p266 = scmp.lt.s32.totalorder %s25, 4
      // Predicated region
      $region13: #{tpu_custom_call.1} parent=5 // pred_check
        %p267 = pneg %p266
      $region14: #{tpu_custom_call.1} parent=5 // pred_check_branch
        %269 = sbr.rel (%p267) target = $region16
      $region15: #{tpu_custom_call.1} parent=5 // pred_region
        // Predicated region
        $region17: #{tpu_custom_call.1} parent=15 // pred_check
          %p270 = pneg %p65
        $region18: #{tpu_custom_call.1} parent=15 // pred_check_branch
          %272 = sbr.rel (%p270) target = $region20
        $region19: #{tpu_custom_call.1} parent=15 // pred_region
          %s273 = sand.u32 %s55, 1
          %s274 = scalar_lea.sflag [#allocation3], %s273
          %s275 = sand.u32 %s55, 1
          %s276 = smul.addr %s275, 16
          %s277 = scalar_lea.vmem [#allocation2], %s276
          %s278 = smul.u32 %s32, 2
          %s279 = sadd.s32 %s278, %s33
          %p280 = scmp.lt.s32.totalorder %s279, 3
          %s281 = scalar_select %p280, %s279, 3
          %s282 = smul.u32 4, %s281
          %s284 = ssub.s32 256, 256
          %285 = vsyncadd %s274, %s284
          %s286 = smul.addr %s282, 64
          %s287 = scalar_lea.hbm %s0, %s286
          %s288 = sshll.u32 %s277, 4
          %s289 = int_to_ptr.vmem [resolvable:$true] %s288
          %294 = dma.hbm_to_vmem [thread:$0]  %s287, 256, %s289, %s274, 64, 64, 4
        $region20: #{tpu_custom_call.1} parent=15 // pred_fallthru
          _
        // Predicated region
        $region21: #{tpu_custom_call.1} parent=15 // pred_check
          %p295 = pneg %p99
        $region22: #{tpu_custom_call.1} parent=15 // pred_check_branch
          %297 = sbr.rel (%p295) target = $region24
        $region23: #{tpu_custom_call.1} parent=15 // pred_region
          %s298 = sand.u32 %s25, 1
          %s299 = scalar_lea.sflag [#allocation6], %s298
          %s300 = sand.u32 %s89, 1
          %s301 = smul.addr %s300, 16
          %s302 = scalar_lea.vmem [#allocation5], %s301
          %s303 = smul.u32 %s32, 2
          %s304 = sadd.s32 %s303, %s33
          %p305 = scmp.lt.s32.totalorder %s304, 3
          %s306 = scalar_select %p305, %s304, 3
          %s307 = smul.u32 4, %s306
          %s309 = ssub.s32 256, 256
          %310 = vsyncadd %s299, %s309
          %s311 = smul.addr %s307, 64
          %s312 = scalar_lea.hbm %s1, %s311
          %s313 = sshll.u32 %s302, 4
          %s314 = int_to_ptr.vmem [resolvable:$true] %s313
          %319 = dma.hbm_to_vmem [thread:$0]  %s312, 256, %s314, %s299, 64, 64, 4
        $region24: #{tpu_custom_call.1} parent=15 // pred_fallthru
          _
        // Predicated region
        $region25: #{tpu_custom_call.1} parent=15 // pred_check
          %p320 = pneg %p133
        $region26: #{tpu_custom_call.1} parent=15 // pred_check_branch
          %322 = sbr.rel (%p320) target = $region28
        $region27: #{tpu_custom_call.1} parent=15 // pred_region
          %s323 = sand.u32 %s25, 1
          %s324 = scalar_lea.sflag [#allocation6], %s323
          %s325 = sand.u32 %s123, 1
          %s326 = smul.addr %s325, 32
          %s327 = scalar_lea.vmem [#allocation7], %s326
          %s328 = smul.u32 %s32, 2
          %s329 = sadd.s32 %s328, %s33
          %p330 = scmp.lt.s32.totalorder %s329, 0
          %s331 = scalar_select %p330, %s329, 0
          %s332 = smul.u32 4, %s331
          %s334 = ssub.s32 512, 512
          %335 = vsyncadd %s324, %s334
          %s336 = smul.addr %s332, 128
          %s337 = scalar_lea.hbm %s2, %s336
          %s338 = sshll.u32 %s327, 4
          %s339 = int_to_ptr.vmem [resolvable:$true] %s338
          %344 = dma.hbm_to_vmem [thread:$0]  %s337, 512, %s339, %s324, 128, 128, 8
        $region28: #{tpu_custom_call.1} parent=15 // pred_fallthru
          _
        // Predicated region
        $region29: #{tpu_custom_call.1} parent=15 // pred_check
          %p345 = pneg %p167
        $region30: #{tpu_custom_call.1} parent=15 // pred_check_branch
          %347 = sbr.rel (%p345) target = $region32
        $region31: #{tpu_custom_call.1} parent=15 // pred_region
          %s348 = smul.u32 %s32, 2
          %s349 = sadd.s32 %s348, %s33
          %p350 = scmp.lt.s32.totalorder %s349, 0
          %s351 = scalar_select %p350, %s349, 0
          %p352 = scmp.lt.s32.totalorder %s351, 0
          %s353 = scalar_select %p352, %s351, 0
          %s354 = smul.addr %s353, 8
          %s355 = scalar_lea.vmem %s3, %s354
          %s356 = smul.u32 %s32, 2
          %s357 = sadd.s32 %s356, %s33
          %p358 = scmp.lt.s32.totalorder %s357, 0
          %s359 = scalar_select %p358, %s357, 0
        $region32: #{tpu_custom_call.1} parent=15 // pred_fallthru
          _
      $region16: #{tpu_custom_call.1} parent=5 // pred_fallthru
        _
      %p360 = scmp.le.s32.totalorder 1, %s25
      %p361 = scmp.lt.s32.totalorder %s25, 5
      %p362 = pnand %p360, %p361
      %p363 = pneg %p362
      // Predicated region
      $region33: #{tpu_custom_call.1} parent=5 // pred_check
        _
      $region34: #{tpu_custom_call.1} parent=5 // pred_check_branch
        %365 = sbr.rel (%p362) target = $region36
      $region35: #{tpu_custom_call.1} parent=5 // pred_region
        %s366 = ssub.s32 %s25, 1
        %s367 = sand.u32 %s58, 1
        %s368 = scalar_lea.sflag [#allocation3], %s367
        %s369 = sand.u32 %s58, 1
        %s370 = smul.addr %s369, 16
        %s371 = scalar_lea.vmem [#allocation2], %s370
        // Predicated region
        $region37: #{tpu_custom_call.1} parent=35 // pred_check
          %p372 = pneg %p71
        $region38: #{tpu_custom_call.1} parent=35 // pred_check_branch
          %374 = sbr.rel (%p372) target = $region40
        $region39: #{tpu_custom_call.1} parent=35 // pred_region
          %375 = dma.done %s368, 256
        $region40: #{tpu_custom_call.1} parent=35 // pred_fallthru
          _
        %s376 = sand.u32 %s30, 1
        %s377 = scalar_lea.sflag [#allocation6], %s376
        %s378 = sand.u32 %s92, 1
        %s379 = smul.addr %s378, 16
        %s380 = scalar_lea.vmem [#allocation5], %s379
        // Predicated region
        $region41: #{tpu_custom_call.1} parent=35 // pred_check
          %p381 = pneg %p105
        $region42: #{tpu_custom_call.1} parent=35 // pred_check_branch
          %383 = sbr.rel (%p381) target = $region44
        $region43: #{tpu_custom_call.1} parent=35 // pred_region
          %384 = dma.done %s377, 256
        $region44: #{tpu_custom_call.1} parent=35 // pred_fallthru
          _
        %s385 = sand.u32 %s30, 1
        %s386 = scalar_lea.sflag [#allocation6], %s385
        %s387 = sand.u32 %s126, 1
        %s388 = smul.addr %s387, 32
        %s389 = scalar_lea.vmem [#allocation7], %s388
        // Predicated region
        $region45: #{tpu_custom_call.1} parent=35 // pred_check
          %p390 = pneg %p139
        $region46: #{tpu_custom_call.1} parent=35 // pred_check_branch
          %392 = sbr.rel (%p390) target = $region48
        $region47: #{tpu_custom_call.1} parent=35 // pred_region
          %393 = dma.done %s386, 512
        $region48: #{tpu_custom_call.1} parent=35 // pred_fallthru
          _
        %s394 = sand.u32 %s58, 1
        %s395 = scalar_lea.sflag [#allocation3], %s394
        %s396 = sand.u32 %s58, 1
        %s397 = smul.addr %s396, 16
        %s398 = scalar_lea.vmem [#allocation2], %s397
        %p399 = pneg %p71
        %p400 = pneg %p68
        %s401 = sand.u32 %s30, 1
        %s402 = scalar_lea.sflag [#allocation6], %s401
        %s403 = sand.u32 %s92, 1
        %s404 = smul.addr %s403, 16
        %s405 = scalar_lea.vmem [#allocation5], %s404
        %p406 = pneg %p105
        %p407 = pneg %p102
        %s408 = sand.u32 %s30, 1
        %s409 = scalar_lea.sflag [#allocation6], %s408
        %s410 = sand.u32 %s126, 1
        %s411 = smul.addr %s410, 32
        %s412 = scalar_lea.vmem [#allocation7], %s411
        %p413 = pneg %p139
        %p414 = pneg %p136
        %s415 = smul.u32 %s34, 2
        %s416 = sadd.s32 %s415, %s35
        %p417 = scmp.lt.s32.totalorder %s416, 0
        %s418 = scalar_select %p417, %s416, 0
        %p419 = scmp.lt.s32.totalorder %s418, 0
        %s420 = scalar_select %p419, %s418, 0
        %s421 = smul.addr %s420, 8
        %s422 = scalar_lea.vmem %s3, %s421
        %p423 = pneg %p173
        %p424 = pneg %p170
        %p425 = pneg %p199
        %p426 = pneg %p196
        %s427 = sand.u32 %s186, 1
        %s428 = scalar_lea.sflag [#allocation4], %s427
        %s429 = sand.u32 %s186, 1
        %s430 = smul.addr %s429, 8
        %s431 = scalar_lea.vmem [#allocation8], %s430
        %p432 = pneg %p225
        %p433 = pneg %p222
        %s434 = sand.u32 %s30, 1
        %s435 = scalar_lea.sflag [#allocation10], %s434
        %s436 = sand.u32 %s212, 1
        %s437 = smul.addr %s436, 8
        %s438 = scalar_lea.vmem [#allocation9], %s437
        %p439 = pneg %p251
        %p440 = pneg %p248
        %s441 = sand.u32 %s30, 1
        %s442 = scalar_lea.sflag [#allocation10], %s441
        %s443 = sand.u32 %s238, 1
        %s444 = smul.addr %s443, 8
        %s445 = scalar_lea.vmem [#allocation11], %s444
        %s446 = smul.u32 %s34, 2
        %s447 = sadd.s32 %s446, %s35
        %p448 = scmp.lt.s32.totalorder %s447, 3
        %s449 = scalar_select %p448, %s447, 3
        %s450 = smul.u32 4, %s449
        %s451 = smul.u32 %s34, 2
        %s452 = sadd.s32 %s451, %s35
        %p453 = scmp.lt.s32.totalorder %s452, 3
        %s454 = scalar_select %p453, %s452, 3
        %s455 = smul.u32 4, %s454
        %s456 = smul.u32 %s34, 2
        %s457 = sadd.s32 %s456, %s35
        %p458 = scmp.lt.s32.totalorder %s457, 0
        %s459 = scalar_select %p458, %s457, 0
        %s460 = smul.u32 4, %s459
        %s461 = smul.u32 %s34, 2
        %s462 = sadd.s32 %s461, %s35
        %p463 = scmp.lt.s32.totalorder %s462, 0
        %s464 = scalar_select %p463, %s462, 0
        %p465 = scmp.lt.s32.totalorder %s464, 0
        %s466 = scalar_select %p465, %s464, 0
        %s467 = smul.addr %s466, 8
        %s468 = scalar_lea.vmem %s3, %s467
        %s469 = smul.u32 %s34, 2
        %s470 = sadd.s32 %s469, %s35
        %p471 = scmp.lt.s32.totalorder %s470, 0
        %s472 = scalar_select %p471, %s470, 0
        %s473 = smul.u32 %s34, 2
        %s474 = sadd.s32 %s473, %s35
        %p475 = scmp.eq.s32.totalorder %s35, 0
        // Predicated region
        $region49: #{tpu_custom_call.1} parent=35 // pred_check
          %p476 = pneg %p475
        $region50: #{tpu_custom_call.1} parent=35 // pred_check_branch
          %478 = sbr.rel (%p476) target = $region52
        $region51: #{tpu_custom_call.1} parent=35 // pred_region
          %479 = vst [vmem:[%s431] sm:$0xff] 0.0
          %480 = vst [vmem:[%s438] sm:$0xff] 0.0
          %481 = vst [vmem:[%s445] sm:$0xff] 0.0
        $region52: #{tpu_custom_call.1} parent=35 // pred_fallthru
          _
        %v482 = vld [vmem:[%s371] sm:$0xf]
        %v483 = vld [vmem:[%s371 + $0x4] sm:$0xf]
        %v484 = vld [vmem:[%s371 + $0x8] sm:$0xf]
        %v485 = vld [vmem:[%s371 + $0xc] sm:$0xf]
        %v486 = vunpack.c.l.bf16 %v482
        %v487 = vunpack.c.l.bf16 %v483
        %v488 = vunpack.c.l.bf16 %v484
        %v489 = vunpack.c.l.bf16 %v485
        %v490 = vld [vmem:[%s380] sm:$0xf]
        %v491 = vld [vmem:[%s380 + $0x4] sm:$0xf]
        %v492 = vld [vmem:[%s380 + $0x8] sm:$0xf]
        %v493 = vld [vmem:[%s380 + $0xc] sm:$0xf]
        %v494 = vunpack.c.l.bf16 %v490
        %v495 = vunpack.c.l.bf16 %v491
        %v496 = vunpack.c.l.bf16 %v492
        %v497 = vunpack.c.l.bf16 %v493
        %v498 = vld [vmem:[%s431] sm:$0xff]
        %v499 = vmax.f32 %v494, 0.0
        %v500 = vmax.f32 %v495, 0.0
        %v501 = vmax.f32 %v496, 0.0
        %v502 = vmax.f32 %v497, 0.0
        %v503 = vmul.f32 %v494, %v486
        %v504 = vmul.f32 %v495, %v487
        %v505 = vmul.f32 %v496, %v488
        %v506 = vmul.f32 %v497, %v489
        %v507 = vsub.f32 %v499, %v503
        %v508 = vsub.f32 %v500, %v504
        %v509 = vsub.f32 %v501, %v505
        %v510 = vsub.f32 %v502, %v506
        %v511 = vand.u32 2147483647, %v494
        %v512 = vand.u32 2147483647, %v495
        %v513 = vand.u32 2147483647, %v496
        %v514 = vand.u32 2147483647, %v497
        %v515 = vsub.f32 0.0, %v511
        %v516 = vsub.f32 0.0, %v512
        %v517 = vsub.f32 0.0, %v513
        %v518 = vsub.f32 0.0, %v514
        %v519 = vmul.f32 %v515, 1.442695
        %v520 = vpow.pop %v519
        %v521 = vmul.f32 %v516, 1.442695
        %v522 = vpow.pop %v521
        %v523 = vmul.f32 %v517, 1.442695
        %v524 = vpow.pop %v523
        %v525 = vmul.f32 %v518, 1.442695
        %v526 = vpow.pop %v525
        %v527 = vadd.f32 %v520, 1.0
        %v528 = vlog2.pop %v527
        %v529 = vmul.f32 %v528, 0.6931472
        %v530 = vmul.f32 -0.5, %v520
        %v531 = vadd.f32 %v530, 1.0
        %v532 = vmul.f32 %v531, %v520
        %v533 = vand.u32 2147483647, %v520
        %vm534 = vcmp.lt.f32.partialorder %v533, 0.0004427343
        %v535 = vsel %vm534, %v532, %v529
        %v536 = vadd.f32 %v522, 1.0
        %v537 = vlog2.pop %v536
        %v538 = vmul.f32 %v537, 0.6931472
        %v539 = vmul.f32 -0.5, %v522
        %v540 = vadd.f32 %v539, 1.0
        %v541 = vmul.f32 %v540, %v522
        %v542 = vand.u32 2147483647, %v522
        %vm543 = vcmp.lt.f32.partialorder %v542, 0.0004427343
        %v544 = vsel %vm543, %v541, %v538
        %v545 = vadd.f32 %v524, 1.0
        %v546 = vlog2.pop %v545
        %v547 = vmul.f32 %v546, 0.6931472
        %v548 = vmul.f32 -0.5, %v524
        %v549 = vadd.f32 %v548, 1.0
        %v550 = vmul.f32 %v549, %v524
        %v551 = vand.u32 2147483647, %v524
        %vm552 = vcmp.lt.f32.partialorder %v551, 0.0004427343
        %v553 = vsel %vm552, %v550, %v547
        %v554 = vadd.f32 %v526, 1.0
        %v555 = vlog2.pop %v554
        %v556 = vmul.f32 %v555, 0.6931472
        %v557 = vmul.f32 -0.5, %v526
        %v558 = vadd.f32 %v557, 1.0
        %v559 = vmul.f32 %v558, %v526
        %v560 = vand.u32 2147483647, %v526
        %vm561 = vcmp.lt.f32.partialorder %v560, 0.0004427343
        %v562 = vsel %vm561, %v559, %v556
        %v563 = vadd.f32 %v507, %v535
        %v564 = vadd.f32 %v508, %v544
        %v565 = vadd.f32 %v509, %v553
        %v566 = vadd.f32 %v510, %v562
        %v567 = vadd.f32 %v563, %v565
        %v568 = vadd.f32 %v564, %v566
        %v569 = vadd.f32 %v567, %v568
        %v570 = vadd.f32 %v498, %v569
        %571 = vst [vmem:[%s431] sm:$0xff] %v570
        %p572 = scmp.lt.s32.totalorder %s474, 1
        // Predicated region
        $region53: #{tpu_custom_call.1} parent=35 // pred_check
          %p573 = pneg %p572
        $region54: #{tpu_custom_call.1} parent=35 // pred_check_branch
          %575 = sbr.rel (%p573) target = $region56
        $region55: #{tpu_custom_call.1} parent=35 // pred_region
          %v576 = vld [vmem:[%s468] sm:$0xff]
          %v577 = vunpack.c.0.s8 %v576
          %v578 = vunpack.c.1.s8 %v576
          %v579 = vunpack.c.2.s8 %v576
          %v580 = vunpack.c.3.s8 %v576
          %v581 = vand.u32 %v577, 1
          %v582 = vand.u32 %v578, 1
          %v583 = vand.u32 %v579, 1
          %v584 = vand.u32 %v580, 1
          %vm585 = vcmp.ne.s32.totalorder %v581, 0
          %vm586 = vcmp.ne.s32.totalorder %v582, 0
          %vm587 = vcmp.ne.s32.totalorder %v583, 0
          %vm588 = vcmp.ne.s32.totalorder %v584, 0
          %v589 = vshra.s32 %v577, 1
          %v590 = vshra.s32 %v578, 1
          %v591 = vshra.s32 %v579, 1
          %v592 = vshra.s32 %v580, 1
          %v593 = vcvt.s32.f32 %v589
          %v594 = vcvt.s32.f32 %v590
          %v595 = vcvt.s32.f32 %v591
          %v596 = vcvt.s32.f32 %v592
          %v597 = vld [vmem:[%s389] sm:$0xff]
          %v598 = vld [vmem:[%s389 + $0x8] sm:$0xff]
          %v599 = vld [vmem:[%s389 + $0x10] sm:$0xff]
          %v600 = vld [vmem:[%s389 + $0x18] sm:$0xff]
          %v601 = vmax.f32 %v597, 0.0
          %v602 = vmax.f32 %v598, 0.0
          %v603 = vmax.f32 %v599, 0.0
          %v604 = vmax.f32 %v600, 0.0
          %v605 = vmul.f32 %v597, %v593
          %v606 = vmul.f32 %v598, %v594
          %v607 = vmul.f32 %v599, %v595
          %v608 = vmul.f32 %v600, %v596
          %v609 = vsub.f32 %v601, %v605
          %v610 = vsub.f32 %v602, %v606
          %v611 = vsub.f32 %v603, %v607
          %v612 = vsub.f32 %v604, %v608
          %v613 = vand.u32 2147483647, %v597
          %v614 = vand.u32 2147483647, %v598
          %v615 = vand.u32 2147483647, %v599
          %v616 = vand.u32 2147483647, %v600
          %v617 = vsub.f32 0.0, %v613
          %v618 = vsub.f32 0.0, %v614
          %v619 = vsub.f32 0.0, %v615
          %v620 = vsub.f32 0.0, %v616
          %v621 = vmul.f32 %v617, 1.442695
          %v622 = vpow.pop %v621
          %v623 = vmul.f32 %v618, 1.442695
          %v624 = vpow.pop %v623
          %v625 = vmul.f32 %v619, 1.442695
          %v626 = vpow.pop %v625
          %v627 = vmul.f32 %v620, 1.442695
          %v628 = vpow.pop %v627
          %v629 = vadd.f32 %v622, 1.0
          %v630 = vlog2.pop %v629
          %v631 = vmul.f32 %v630, 0.6931472
          %v632 = vmul.f32 -0.5, %v622
          %v633 = vadd.f32 %v632, 1.0
          %v634 = vmul.f32 %v633, %v622
          %v635 = vand.u32 2147483647, %v622
          %vm636 = vcmp.lt.f32.partialorder %v635, 0.0004427343
          %v637 = vsel %vm636, %v634, %v631
          %v638 = vadd.f32 %v624, 1.0
          %v639 = vlog2.pop %v638
          %v640 = vmul.f32 %v639, 0.6931472
          %v641 = vmul.f32 -0.5, %v624
          %v642 = vadd.f32 %v641, 1.0
          %v643 = vmul.f32 %v642, %v624
          %v644 = vand.u32 2147483647, %v624
          %vm645 = vcmp.lt.f32.partialorder %v644, 0.0004427343
          %v646 = vsel %vm645, %v643, %v640
          %v647 = vadd.f32 %v626, 1.0
          %v648 = vlog2.pop %v647
          %v649 = vmul.f32 %v648, 0.6931472
          %v650 = vmul.f32 -0.5, %v626
          %v651 = vadd.f32 %v650, 1.0
          %v652 = vmul.f32 %v651, %v626
          %v653 = vand.u32 2147483647, %v626
          %vm654 = vcmp.lt.f32.partialorder %v653, 0.0004427343
          %v655 = vsel %vm654, %v652, %v649
          %v656 = vadd.f32 %v628, 1.0
          %v657 = vlog2.pop %v656
          %v658 = vmul.f32 %v657, 0.6931472
          %v659 = vmul.f32 -0.5, %v628
          %v660 = vadd.f32 %v659, 1.0
          %v661 = vmul.f32 %v660, %v628
          %v662 = vand.u32 2147483647, %v628
          %vm663 = vcmp.lt.f32.partialorder %v662, 0.0004427343
          %v664 = vsel %vm663, %v661, %v658
          %v665 = vadd.f32 %v609, %v637
          %v666 = vadd.f32 %v610, %v646
          %v667 = vadd.f32 %v611, %v655
          %v668 = vadd.f32 %v612, %v664
          %v669 = vld [vmem:[%s438] sm:$0xff]
          %v670 = vsel %vm585, %v665, 0.0
          %v671 = vsel %vm586, %v666, 0.0
          %v672 = vsel %vm587, %v667, 0.0
          %v673 = vsel %vm588, %v668, 0.0
          %v674 = vadd.f32 %v670, %v672
          %v675 = vadd.f32 %v671, %v673
          %v676 = vadd.f32 %v674, %v675
          %v677 = vadd.f32 %v669, %v676
          %678 = vst [vmem:[%s438] sm:$0xff] %v677
          %v679 = vld [vmem:[%s445] sm:$0xff]
          %v680 = vsel %vm585, 1.0, 0.0
          %v681 = vsel %vm586, 1.0, 0.0
          %v682 = vsel %vm587, 1.0, 0.0
          %v683 = vsel %vm588, 1.0, 0.0
          %v684 = vadd.f32 %v680, %v682
          %v685 = vadd.f32 %v681, %v683
          %v686 = vadd.f32 %v684, %v685
          %v687 = vadd.f32 %v679, %v686
          %688 = vst [vmem:[%s445] sm:$0xff] %v687
        $region56: #{tpu_custom_call.1} parent=35 // pred_fallthru
          _
        %s689 = sand.u32 %s186, 1
        %s690 = scalar_lea.sflag [#allocation4], %s689
        %s691 = sand.u32 %s186, 1
        %s692 = smul.addr %s691, 8
        %s693 = scalar_lea.vmem [#allocation8], %s692
        %s694 = sand.u32 %s30, 1
        %s695 = scalar_lea.sflag [#allocation10], %s694
        %s696 = sand.u32 %s212, 1
        %s697 = smul.addr %s696, 8
        %s698 = scalar_lea.vmem [#allocation9], %s697
        %s699 = sand.u32 %s30, 1
        %s700 = scalar_lea.sflag [#allocation10], %s699
        %s701 = sand.u32 %s238, 1
        %s702 = smul.addr %s701, 8
        %s703 = scalar_lea.vmem [#allocation11], %s702
        // Predicated region
        $region57: #{tpu_custom_call.1} parent=35 // pred_check
          %p704 = pneg %p196
        $region58: #{tpu_custom_call.1} parent=35 // pred_check_branch
          %706 = sbr.rel (%p704) target = $region60
        $region59: #{tpu_custom_call.1} parent=35 // pred_region
          %s708 = ssub.s32 128, 128
          %709 = vsyncadd %s690, %s708
          %s710 = smul.addr %s34, 128
          %s711 = scalar_lea.hbm %s4, %s710
          %s713 = sshll.u32 %s693, 4
          %s714 = int_to_ptr.vmem [resolvable:$true] %s713
          %716 = dma.vmem_to_hbm [thread:$0]  %s714, 128, %s711, %s690
        $region60: #{tpu_custom_call.1} parent=35 // pred_fallthru
          _
        // Predicated region
        $region61: #{tpu_custom_call.1} parent=35 // pred_check
          %p717 = pneg %p222
        $region62: #{tpu_custom_call.1} parent=35 // pred_check_branch
          %719 = sbr.rel (%p717) target = $region64
        $region63: #{tpu_custom_call.1} parent=35 // pred_region
          %s721 = ssub.s32 128, 128
          %722 = vsyncadd %s695, %s721
          %s723 = smul.addr %s34, 128
          %s724 = scalar_lea.hbm %s5, %s723
          %s726 = sshll.u32 %s698, 4
          %s727 = int_to_ptr.vmem [resolvable:$true] %s726
          %729 = dma.vmem_to_hbm [thread:$0]  %s727, 128, %s724, %s695
        $region64: #{tpu_custom_call.1} parent=35 // pred_fallthru
          _
        // Predicated region
        $region65: #{tpu_custom_call.1} parent=35 // pred_check
          %p730 = pneg %p248
        $region66: #{tpu_custom_call.1} parent=35 // pred_check_branch
          %732 = sbr.rel (%p730) target = $region68
        $region67: #{tpu_custom_call.1} parent=35 // pred_region
          %s734 = ssub.s32 128, 128
          %735 = vsyncadd %s700, %s734
          %s736 = smul.addr %s34, 128
          %s737 = scalar_lea.hbm %s6, %s736
          %s739 = sshll.u32 %s703, 4
          %s740 = int_to_ptr.vmem [resolvable:$true] %s739
          %742 = dma.vmem_to_hbm [thread:$0]  %s740, 128, %s737, %s700
        $region68: #{tpu_custom_call.1} parent=35 // pred_fallthru
          _
      $region36: #{tpu_custom_call.1} parent=5 // pred_fallthru
        _
      %p743 = scmp.le.s32.totalorder 2, %s25
      // Predicated region
      $region69: #{tpu_custom_call.1} parent=5 // pred_check
        %p744 = pneg %p743
      $region70: #{tpu_custom_call.1} parent=5 // pred_check_branch
        %746 = sbr.rel (%p744) target = $region72
      $region71: #{tpu_custom_call.1} parent=5 // pred_region
        %s747 = ssub.s32 %s25, 2
        // Predicated region
        $region73: #{tpu_custom_call.1} parent=71 // pred_check
          %p748 = pneg %p202
        $region74: #{tpu_custom_call.1} parent=71 // pred_check_branch
          %750 = sbr.rel (%p748) target = $region76
        $region75: #{tpu_custom_call.1} parent=71 // pred_region
          %s751 = sand.u32 %s187, 1
          %s752 = scalar_lea.sflag [#allocation4], %s751
          %s753 = sand.u32 %s187, 1
          %s754 = smul.addr %s753, 8
          %s755 = scalar_lea.vmem [#allocation8], %s754
          %756 = dma.done %s752, 128
        $region76: #{tpu_custom_call.1} parent=71 // pred_fallthru
          _
        // Predicated region
        $region77: #{tpu_custom_call.1} parent=71 // pred_check
          %p757 = pneg %p228
        $region78: #{tpu_custom_call.1} parent=71 // pred_check_branch
          %759 = sbr.rel (%p757) target = $region80
        $region79: #{tpu_custom_call.1} parent=71 // pred_region
          %s760 = sand.u32 %s31, 1
          %s761 = scalar_lea.sflag [#allocation10], %s760
          %s762 = sand.u32 %s213, 1
          %s763 = smul.addr %s762, 8
          %s764 = scalar_lea.vmem [#allocation9], %s763
          %765 = dma.done %s761, 128
        $region80: #{tpu_custom_call.1} parent=71 // pred_fallthru
          _
        // Predicated region
        $region81: #{tpu_custom_call.1} parent=71 // pred_check
          %p766 = pneg %p254
        $region82: #{tpu_custom_call.1} parent=71 // pred_check_branch
          %768 = sbr.rel (%p766) target = $region84
        $region83: #{tpu_custom_call.1} parent=71 // pred_region
          %s769 = sand.u32 %s31, 1
          %s770 = scalar_lea.sflag [#allocation10], %s769
          %s771 = sand.u32 %s239, 1
          %s772 = smul.addr %s771, 8
          %s773 = scalar_lea.vmem [#allocation11], %s772
          %774 = dma.done %s770, 128
        $region84: #{tpu_custom_call.1} parent=71 // pred_fallthru
          _
      $region72: #{tpu_custom_call.1} parent=5 // pred_fallthru
        _
    $region6: #{tpu_custom_call.1} parent=1 // loop_footer
      %s29 = sadd.s32 1, %s25
    $region7: #{tpu_custom_call.1} parent=1 // loop_footer_branch
      %24 = sbr.rel target = $region3
    $region8: #{tpu_custom_call.1} parent=1 // loop_exit
      _
    %775 = vsyncpa [#allocation3], 1
    %s776 = scalar_lea.sflag [#allocation3], 1
    %777 = vsyncpa %s776, 1
    %778 = vsyncpa [#allocation6], 1
    %s779 = scalar_lea.sflag [#allocation6], 1
    %780 = vsyncpa %s779, 1
    %781 = vsyncpa [#allocation4], 1
    %s782 = scalar_lea.sflag [#allocation4], 1
    %783 = vsyncpa %s782, 1
    %784 = vsyncpa [#allocation10], 1
    %s785 = scalar_lea.sflag [#allocation10], 1
    %786 = vsyncpa %s785, 1

</llo_original>
